<compile_context>
chip_gen: v5e
topology: v5e:2x2
jax: 0.10.0
libtpu: 0.0.40
codegen_flags: <defaults>
</compile_context>

<pallas_src>
import jax
import jax.numpy as jnp
from jax.experimental import pallas as pl
from jax.experimental.pallas import tpu as pltpu


def carnn_kernel(x_ref, w1_ref, b1_ref, w2_ref, b2_ref, w3_ref, b3_ref, o_ref):
    # One batch tile per grid step; weights live fully in VMEM across steps.
    x = x_ref[...].astype(w1_ref.dtype)                 # in-kernel f32->bf16 cast (VPU)
    h1 = jnp.dot(x, w1_ref[...], preferred_element_type=jnp.float32)
    h1 = jnp.maximum(h1 + b1_ref[...], 0.0)             # f32 accumulator
    h2 = jnp.dot(h1.astype(w2_ref.dtype), w2_ref[...],
                 preferred_element_type=jnp.float32)
    h2 = jnp.maximum(h2 + b2_ref[...], 0.0)             # f32 accumulator
    out = jnp.dot(h2.astype(w3_ref.dtype), w3_ref[...],
                  preferred_element_type=jnp.float32) + b3_ref[...]
    o_ref[...] = out.astype(o_ref.dtype)


def _round_up8(n):
    return max(8, ((int(n) + 7) // 8) * 8)


def carnn_forward(x, params, *, block_batch=4096, compute_dtype=jnp.bfloat16):
    """Fused MLP forward. x: (B, 9) float32 -> (B, 3) float32."""
    w1, b1, w2, b2, w3, b3 = params
    B, in_dim = x.shape
    out_dim = w3.shape[1]

    # Only the weights are pre-cast (tiny, one-time); x is read as f32 by the
    # kernel and cast on-chip, and biases stay f32 (added in the f32 acc).
    w1c = w1.astype(compute_dtype)
    w2c = w2.astype(compute_dtype)
    w3c = w3.astype(compute_dtype)

    # Batch tile: multiple of 8 sublanes, no larger than B (rounded up); cap it
    # so the grid keeps >= 2 steps when B allows (v7x megacore sharding).
    tb = _round_up8(min(block_batch, B))
    if B > 16:
        tb = min(tb, _round_up8(pl.cdiv(B, 2)))
    n_blocks = pl.cdiv(B, tb)

    def const_spec(a):
        return pl.BlockSpec(a.shape, lambda i: tuple(0 for _ in a.shape))

    weight_bytes = sum(int(a.size) * a.dtype.itemsize
                       for a in (w1c, b1, w2c, b2, w3c, b3))
    cost = pl.CostEstimate(
        flops=2 * B * (in_dim * w1.shape[1] + w1.shape[1] * w2.shape[1]
                       + w2.shape[1] * out_dim),
        transcendentals=0,
        bytes_accessed=B * in_dim * 4 + B * out_dim * 4 + weight_bytes,
    )

    out = pl.pallas_call(
        carnn_kernel,
        out_shape=jax.ShapeDtypeStruct((B, out_dim), jnp.float32),
        grid=(n_blocks,),
        in_specs=[
            pl.BlockSpec((tb, in_dim), lambda i: (i, 0)),   # x: f32, tiled over batch
            const_spec(w1c), const_spec(b1),                # weights/biases resident
            const_spec(w2c), const_spec(b2),
            const_spec(w3c), const_spec(b3),
        ],
        out_specs=pl.BlockSpec((tb, out_dim), lambda i: (i, 0)),
        compiler_params=pltpu.CompilerParams(
            dimension_semantics=("parallel",),              # v7x megacore sharding
            vmem_limit_bytes=32 * 1024 * 1024,              # safe on v5e/v6e/v7x
        ),
        cost_estimate=cost,
    )(x, w1c, b1, w2c, b2, w3c, b3)

    # Ragged last block: OOB rows were never written; (B, out_dim) is exact.
    return out
    # TODO(synk): if this kernel ever gains cross-row ops (reductions/norm), the
    # ragged-last-block handling must be revisited (garbage tail rows).


def init_params(key):
    """Deterministic init mirroring nn.Linear default (uniform +/- 1/sqrt(fan_in))."""
    dims = [(9, 128), (128, 64), (64, 3)]
    params = []
    for (fan_in, fan_out) in dims:
        key, kw, kb = jax.random.split(key, 3)
        bound = 1.0 / (fan_in ** 0.5)
        w = jax.random.uniform(kw, (fan_in, fan_out), jnp.float32, -bound, bound)
        b = jax.random.uniform(kb, (1, fan_out), jnp.float32, -bound, bound)
        params.extend([w, b])
    return tuple(params)


def reference_forward_f32(x, params):
    """True f32 reference == PyTorch CarNN.forward semantics."""
    w1, b1, w2, b2, w3, b3 = params
    h = jnp.maximum(jnp.dot(x, w1) + b1, 0.0)
    h = jnp.maximum(jnp.dot(h, w2) + b2, 0.0)
    return jnp.dot(h, w3) + b3


def reference_forward_bf16(x, params, compute_dtype=jnp.bfloat16):
    """Reference mirroring the kernel's bf16-operand / f32-accumulate numerics."""
    w1, b1, w2, b2, w3, b3 = params
    cd = compute_dtype
    h = jnp.dot(x.astype(cd), w1.astype(cd), preferred_element_type=jnp.float32) + b1
    h = jnp.maximum(h, 0.0)
    h = jnp.dot(h.astype(cd), w2.astype(cd), preferred_element_type=jnp.float32) + b2
    h = jnp.maximum(h, 0.0)
    return jnp.dot(h.astype(cd), w3.astype(cd), preferred_element_type=jnp.float32) + b3


if __name__ == "__main__":
    key = jax.random.PRNGKey(0)
    kx, kp = jax.random.split(key)
    params = init_params(kp)

    # Small primary test (shape implied by the module: (batch, 9)).
    batch = 8
    x = jax.random.normal(kx, (batch, 9), dtype=jnp.float32)
    out = jax.block_until_ready(carnn_forward(x, params))
    assert out.shape == (batch, 3), out.shape
    # Tight check vs. bf16-matched reference; loose check vs. true f32 module
    # (bf16 operands on a 128-wide contraction: up to ~1e-2 relative error).
    ref_bf16 = reference_forward_bf16(x, params)
    ref_f32 = reference_forward_f32(x, params)
    assert jnp.allclose(out, ref_bf16, atol=1e-3, rtol=1e-3), "mismatch vs bf16 reference (small)"
    assert jnp.allclose(out, ref_f32, atol=3e-2, rtol=3e-2), "mismatch vs f32 reference (small)"

    # Secondary check exercising multi-tile grid + ragged last block (200 = 3*64 + 8).
    x2 = jax.random.normal(kx, (200, 9), dtype=jnp.float32)
    out2 = jax.block_until_ready(carnn_forward(x2, params, block_batch=64))
    assert out2.shape == (200, 3), out2.shape
    ref2_bf16 = reference_forward_bf16(x2, params)
    ref2_f32 = reference_forward_f32(x2, params)
    assert jnp.allclose(out2, ref2_bf16, atol=1e-3, rtol=1e-3), "mismatch vs bf16 reference (tiled)"
    assert jnp.allclose(out2, ref2_f32, atol=3e-2, rtol=3e-2), "mismatch vs f32 reference (tiled)"

    # Third check: default (large) tile path with >=2 grid steps.
    x3 = jax.random.normal(kx, (1000, 9), dtype=jnp.float32)
    out3 = jax.block_until_ready(carnn_forward(x3, params))
    assert out3.shape == (1000, 3), out3.shape
    assert jnp.allclose(out3, reference_forward_bf16(x3, params), atol=1e-3, rtol=1e-3), \
        "mismatch vs bf16 reference (default tile)"

    print("KERNEL_OK")
</pallas_src>

<mosaic_0001>
module attributes {stable_mosaic.version = 11 : i64} {
  func.func @carnn_kernel(%arg0: i32, %arg1: memref<8x9xf32, #tpu.memory_space<vmem>>, %arg2: memref<9x128xbf16, #tpu.memory_space<vmem>>, %arg3: memref<1x128xf32, #tpu.memory_space<vmem>>, %arg4: memref<128x64xbf16, #tpu.memory_space<vmem>>, %arg5: memref<1x64xf32, #tpu.memory_space<vmem>>, %arg6: memref<64x3xbf16, #tpu.memory_space<vmem>>, %arg7: memref<1x3xf32, #tpu.memory_space<vmem>>, %arg8: memref<8x3xf32, #tpu.memory_space<vmem>>) attributes {dimension_semantics = [#tpu.dimension_semantics<parallel>], iteration_bounds = array<i64: 1>, scalar_prefetch = 0 : i64, scratch_operands = 0 : i64, tpu.core_type = #tpu.core_type<tc>, window_params = [{transform_indices = @transform_0, window_bounds = array<i64: 8, 9>}, {pipeline_mode = #tpu.pipeline_mode<synchronous>, transform_indices = @transform_1, window_bounds = array<i64: 9, 128>}, {pipeline_mode = #tpu.pipeline_mode<synchronous>, transform_indices = @transform_2, window_bounds = array<i64: 1, 128>}, {pipeline_mode = #tpu.pipeline_mode<synchronous>, transform_indices = @transform_3, window_bounds = array<i64: 128, 64>}, {pipeline_mode = #tpu.pipeline_mode<synchronous>, transform_indices = @transform_4, window_bounds = array<i64: 1, 64>}, {pipeline_mode = #tpu.pipeline_mode<synchronous>, transform_indices = @transform_5, window_bounds = array<i64: 64, 3>}, {pipeline_mode = #tpu.pipeline_mode<synchronous>, transform_indices = @transform_6, window_bounds = array<i64: 1, 3>}, {transform_indices = @transform_7, window_bounds = array<i64: 8, 3>}]} {
    %c0 = arith.constant 0 : index
    %c0_0 = arith.constant 0 : index
    %0 = vector.load %arg1[%c0, %c0_0] : memref<8x9xf32, #tpu.memory_space<vmem>>, vector<8x9xf32>
    %1 = arith.truncf %0 : vector<8x9xf32> to vector<8x9xbf16>
    %c0_1 = arith.constant 0 : index
    %c0_2 = arith.constant 0 : index
    %2 = vector.load %arg2[%c0_1, %c0_2] : memref<9x128xbf16, #tpu.memory_space<vmem>>, vector<9x128xbf16>
    %cst = arith.constant dense<0.000000e+00> : vector<8x128xf32>
    %3 = tpu.matmul %1, %2, %cst {dimension_numbers = #tpu.dot_dimension_numbers<[1], [0], [0], [1], [0, 0, 1, 1], [], []>} : vector<8x9xbf16>, vector<9x128xbf16>, vector<8x128xf32> -> vector<8x128xf32>
    %c0_3 = arith.constant 0 : index
    %c0_4 = arith.constant 0 : index
    %4 = vector.load %arg3[%c0_3, %c0_4] : memref<1x128xf32, #tpu.memory_space<vmem>>, vector<1x128xf32>
    %5 = vector.broadcast %4 : vector<1x128xf32> to vector<8x128xf32>
    %6 = arith.addf %3, %5 : vector<8x128xf32>
    %cst_5 = arith.constant 0.000000e+00 : f32
    %7 = vector.broadcast %cst_5 : f32 to vector<8x128xf32>
    %8 = arith.maximumf %6, %7 : vector<8x128xf32>
    %9 = arith.truncf %8 : vector<8x128xf32> to vector<8x128xbf16>
    %c0_6 = arith.constant 0 : index
    %c0_7 = arith.constant 0 : index
    %10 = vector.load %arg4[%c0_6, %c0_7] : memref<128x64xbf16, #tpu.memory_space<vmem>>, vector<128x64xbf16>
    %cst_8 = arith.constant dense<0.000000e+00> : vector<8x64xf32>
    %11 = tpu.matmul %9, %10, %cst_8 {dimension_numbers = #tpu.dot_dimension_numbers<[1], [0], [0], [1], [0, 0, 1, 1], [], []>} : vector<8x128xbf16>, vector<128x64xbf16>, vector<8x64xf32> -> vector<8x64xf32>
    %c0_9 = arith.constant 0 : index
    %c0_10 = arith.constant 0 : index
    %12 = vector.load %arg5[%c0_9, %c0_10] : memref<1x64xf32, #tpu.memory_space<vmem>>, vector<1x64xf32>
    %13 = vector.broadcast %12 : vector<1x64xf32> to vector<8x64xf32>
    %14 = arith.addf %11, %13 : vector<8x64xf32>
    %cst_11 = arith.constant 0.000000e+00 : f32
    %15 = vector.broadcast %cst_11 : f32 to vector<8x64xf32>
    %16 = arith.maximumf %14, %15 : vector<8x64xf32>
    %17 = arith.truncf %16 : vector<8x64xf32> to vector<8x64xbf16>
    %c0_12 = arith.constant 0 : index
    %c0_13 = arith.constant 0 : index
    %18 = vector.load %arg6[%c0_12, %c0_13] : memref<64x3xbf16, #tpu.memory_space<vmem>>, vector<64x3xbf16>
    %cst_14 = arith.constant dense<0.000000e+00> : vector<8x3xf32>
    %19 = tpu.matmul %17, %18, %cst_14 {dimension_numbers = #tpu.dot_dimension_numbers<[1], [0], [0], [1], [0, 0, 1, 1], [], []>} : vector<8x64xbf16>, vector<64x3xbf16>, vector<8x3xf32> -> vector<8x3xf32>
    %c0_15 = arith.constant 0 : index
    %c0_16 = arith.constant 0 : index
    %20 = vector.load %arg7[%c0_15, %c0_16] : memref<1x3xf32, #tpu.memory_space<vmem>>, vector<1x3xf32>
    %21 = vector.broadcast %20 : vector<1x3xf32> to vector<8x3xf32>
    %22 = arith.addf %19, %21 : vector<8x3xf32>
    %c0_17 = arith.constant 0 : index
    %c0_18 = arith.constant 0 : index
    %23 = vector.load %arg8[%c0_17, %c0_18] : memref<8x3xf32, #tpu.memory_space<vmem>>, vector<8x3xf32>
    tpu.vector_store %arg8[%c0_17, %c0_18], %22 {strides = array<i32>} : memref<8x3xf32, #tpu.memory_space<vmem>>, vector<8x3xf32>,
    return
  }
  func.func @transform_0(%arg0: i32) -> (i32, i32) {
    %c0_i32 = arith.constant 0 : i32
    %c0_i32_0 = arith.constant 0 : i32
    return %arg0, %c0_i32 : i32, i32
  }
  func.func @transform_1(%arg0: i32) -> (i32, i32) {
    %c0_i32 = arith.constant 0 : i32
    %c0_i32_0 = arith.constant 0 : i32
    %c0_i32_1 = arith.constant 0 : i32
    return %c0_i32, %c0_i32_0 : i32, i32
  }
  func.func @transform_2(%arg0: i32) -> (i32, i32) {
    %c0_i32 = arith.constant 0 : i32
    %c0_i32_0 = arith.constant 0 : i32
    %c0_i32_1 = arith.constant 0 : i32
    return %c0_i32, %c0_i32_0 : i32, i32
  }
  func.func @transform_3(%arg0: i32) -> (i32, i32) {
    %c0_i32 = arith.constant 0 : i32
    %c0_i32_0 = arith.constant 0 : i32
    %c0_i32_1 = arith.constant 0 : i32
    return %c0_i32, %c0_i32_0 : i32, i32
  }
  func.func @transform_4(%arg0: i32) -> (i32, i32) {
    %c0_i32 = arith.constant 0 : i32
    %c0_i32_0 = arith.constant 0 : i32
    %c0_i32_1 = arith.constant 0 : i32
    return %c0_i32, %c0_i32_0 : i32, i32
  }
  func.func @transform_5(%arg0: i32) -> (i32, i32) {
    %c0_i32 = arith.constant 0 : i32
    %c0_i32_0 = arith.constant 0 : i32
    %c0_i32_1 = arith.constant 0 : i32
    return %c0_i32, %c0_i32_0 : i32, i32
  }
  func.func @transform_6(%arg0: i32) -> (i32, i32) {
    %c0_i32 = arith.constant 0 : i32
    %c0_i32_0 = arith.constant 0 : i32
    %c0_i32_1 = arith.constant 0 : i32
    return %c0_i32, %c0_i32_0 : i32, i32
  }
  func.func @transform_7(%arg0: i32) -> (i32, i32) {
    %c0_i32 = arith.constant 0 : i32
    %c0_i32_0 = arith.constant 0 : i32
    return %arg0, %c0_i32 : i32, i32
  }
}

</mosaic_0001>

<llo_original>
// kernel: tpu_custom_call.1
$region0: #{tpu_custom_call.1}
  #allocation0 [shape = 'u32[]', space=smem, size = 0x4, offset = 0x4, fixed_abs, tag = 'smem constant byte address 0x4 - core index']
  #allocation1 [shape = 'u32[72,128]{1,0:T(1,128)}', space=vmem, size = 0x9000, scoped, tag = 'internal scratch']
  %s0 = inlined_call_operand.vmem [shape: f32[8,9], index: 0, kind: input, shape index: {}]
  %s1 = inlined_call_operand.vmem [shape: bf16[9,128], index: 1, kind: input, shape index: {}]
  %s2 = inlined_call_operand.vmem [shape: f32[1,128], index: 2, kind: input, shape index: {}]
  %s3 = inlined_call_operand.vmem [shape: bf16[128,64], index: 3, kind: input, shape index: {}]
  %s4 = inlined_call_operand.vmem [shape: f32[1,64], index: 4, kind: input, shape index: {}]
  %s5 = inlined_call_operand.vmem [shape: bf16[64,3], index: 5, kind: input, shape index: {}]
  %s6 = inlined_call_operand.vmem [shape: f32[1,3], index: 6, kind: input, shape index: {}]
  %s7 = inlined_call_operand.vmem [shape: f32[8,3], index: 7, kind: output, shape index: {}]
  %s8 = sld [smem:[#allocation0]]
  $region38: #{tpu_custom_call.1} parent=0
    _
  %s10 = ssub.s32 1, %s8
  %s11 = scalar_select 0, %s10, %s8
  // Predicated region
  $region2: #{tpu_custom_call.1} parent=0 // pred_check
    _
  $region3: #{tpu_custom_call.1} parent=0 // pred_check_branch
    %13 = sbr.rel (0) target = $region5
  $region4: #{tpu_custom_call.1} parent=0 // pred_region
    _
  $region5: #{tpu_custom_call.1} parent=0 // pred_fallthru
    _
  // Predicated region
  $region6: #{tpu_custom_call.1} parent=0 // pred_check
    _
  $region7: #{tpu_custom_call.1} parent=0 // pred_check_branch
    %15 = sbr.rel (0) target = $region9
  $region8: #{tpu_custom_call.1} parent=0 // pred_region
    _
  $region9: #{tpu_custom_call.1} parent=0 // pred_fallthru
    _
  // Predicated region
  $region10: #{tpu_custom_call.1} parent=0 // pred_check
    _
  $region11: #{tpu_custom_call.1} parent=0 // pred_check_branch
    %17 = sbr.rel (0) target = $region13
  $region12: #{tpu_custom_call.1} parent=0 // pred_region
    _
  $region13: #{tpu_custom_call.1} parent=0 // pred_fallthru
    _
  // Predicated region
  $region14: #{tpu_custom_call.1} parent=0 // pred_check
    _
  $region15: #{tpu_custom_call.1} parent=0 // pred_check_branch
    %19 = sbr.rel (0) target = $region17
  $region16: #{tpu_custom_call.1} parent=0 // pred_region
    _
  $region17: #{tpu_custom_call.1} parent=0 // pred_fallthru
    _
  // Predicated region
  $region18: #{tpu_custom_call.1} parent=0 // pred_check
    _
  $region19: #{tpu_custom_call.1} parent=0 // pred_check_branch
    %21 = sbr.rel (0) target = $region21
  $region20: #{tpu_custom_call.1} parent=0 // pred_region
    _
  $region21: #{tpu_custom_call.1} parent=0 // pred_fallthru
    _
  // Predicated region
  $region22: #{tpu_custom_call.1} parent=0 // pred_check
    _
  $region23: #{tpu_custom_call.1} parent=0 // pred_check_branch
    %23 = sbr.rel (0) target = $region25
  $region24: #{tpu_custom_call.1} parent=0 // pred_region
    _
  $region25: #{tpu_custom_call.1} parent=0 // pred_fallthru
    _
  // Predicated region
  $region26: #{tpu_custom_call.1} parent=0 // pred_check
    _
  $region27: #{tpu_custom_call.1} parent=0 // pred_check_branch
    %25 = sbr.rel (0) target = $region29
  $region28: #{tpu_custom_call.1} parent=0 // pred_region
    _
  $region29: #{tpu_custom_call.1} parent=0 // pred_fallthru
    _
  %v27 = vld [vmem:[%s0] sm:$0xff]
  %v28 = vpack.c.bf16 %v27, %v27
  %v29 = vld [vmem:[%s1] sm:$0xf]
  %v30 = vld [vmem:[%s1 + $0x4] sm:$0x1]
  %v31 = vld [vmem:[%s2] sm:$0x1]
  %v33 = vperm.slane %v31, 0
  %v37 = vunpack.c.l.b16 %v29
  %v38 = vunpack.c.l.b16 %v30
  %v39 = vpack.c.b16 %v38, %v37
  %vm40 = vcmask 72704
  %v42 = vsel %vm40, %v28, 0
  %vm44 = vcmask 1043456
  %vm45 = vcmask 1044480
  %v46 = vsel %vm44, 4294967295, 65535
  %v47 = vsel %vm45, %v46, 0
  %v49 = vand.u32 %v39, %v47
  %51 = vmatpush.bf16.msra.mxu0 0
  %52 = vmatpush.bf16.msra.mxu0 0
  %53 = vmatpush.bf16.msra.mxu0 0
  %54 = vmatpush.bf16.msra.mxu0 0
  %55 = vmatpush.bf16.msra.mxu0 0
  %56 = vmatpush.bf16.msra.mxu0 0
  %57 = vmatpush.bf16.msra.mxu0 0
  %58 = vmatpush.bf16.msra.mxu0 %v49
  %59 = vmatmul.bf16.gmra.mxu0 %v42
  %v60 = vpop.f32.mrf.mxu0
  %v61 = vadd.f32 %v33, %v60
  %v62 = vpop.f32.mrf.mxu0
  %63 = vdwg.mxu0
  %v64 = vmax.f32 %v61, 0.0
  %v65 = vpack.c.bf16 %v64, %v64
  %v66 = vld [vmem:[%s3] sm:$0xf]
  %v67 = vld [vmem:[%s3 + $0x4] sm:$0xf]
  %v68 = vld [vmem:[%s3 + $0x8] sm:$0xf]
  %v69 = vld [vmem:[%s3 + $0xc] sm:$0xf]
  %v70 = vld [vmem:[%s3 + $0x10] sm:$0xf]
  %v71 = vld [vmem:[%s3 + $0x14] sm:$0xf]
  %v72 = vld [vmem:[%s3 + $0x18] sm:$0xf]
  %v73 = vld [vmem:[%s3 + $0x1c] sm:$0xf]
  %v74 = vld [vmem:[%s3 + $0x20] sm:$0xf]
  %v75 = vld [vmem:[%s3 + $0x24] sm:$0xf]
  %v76 = vld [vmem:[%s3 + $0x28] sm:$0xf]
  %v77 = vld [vmem:[%s3 + $0x2c] sm:$0xf]
  %v78 = vld [vmem:[%s3 + $0x30] sm:$0xf]
  %v79 = vld [vmem:[%s3 + $0x34] sm:$0xf]
  %v80 = vld [vmem:[%s3 + $0x38] sm:$0xf]
  %v81 = vld [vmem:[%s3 + $0x3c] sm:$0xf]
  %v82 = vld [vmem:[%s4] sm:$0x1]
  %v84 = vperm.slane %v82, 0
  %v102 = vunpack.c.l.b16 %v66
  %v103 = vunpack.c.l.b16 %v67
  %v104 = vunpack.c.l.b16 %v68
  %v105 = vunpack.c.l.b16 %v69
  %v106 = vunpack.c.l.b16 %v70
  %v107 = vunpack.c.l.b16 %v71
  %v108 = vunpack.c.l.b16 %v72
  %v109 = vunpack.c.l.b16 %v73
  %v110 = vunpack.c.l.b16 %v74
  %v111 = vunpack.c.l.b16 %v75
  %v112 = vunpack.c.l.b16 %v76
  %v113 = vunpack.c.l.b16 %v77
  %v114 = vunpack.c.l.b16 %v78
  %v115 = vunpack.c.l.b16 %v79
  %v116 = vunpack.c.l.b16 %v80
  %v117 = vunpack.c.l.b16 %v81
  %v118 = vpack.c.b16 %v103, %v102
  %v119 = vpack.c.b16 %v105, %v104
  %v120 = vpack.c.b16 %v107, %v106
  %v121 = vpack.c.b16 %v109, %v108
  %v122 = vpack.c.b16 %v111, %v110
  %v123 = vpack.c.b16 %v113, %v112
  %v124 = vpack.c.b16 %v115, %v114
  %v125 = vpack.c.b16 %v117, %v116
  %134 = vmatpush.bf16.msra.mxu0 %v125
  %135 = vmatpush.bf16.msra.mxu0 %v124
  %136 = vmatpush.bf16.msra.mxu0 %v123
  %137 = vmatpush.bf16.msra.mxu0 %v122
  %138 = vmatpush.bf16.msra.mxu0 %v121
  %139 = vmatpush.bf16.msra.mxu0 %v120
  %140 = vmatpush.bf16.msra.mxu0 %v119
  %141 = vmatpush.bf16.msra.mxu0 %v118
  %142 = vmatmul.bf16.gmra.mxu0 %v65
  %v143 = vpop.f32.mrf.mxu0
  %v144 = vadd.f32 %v84, %v143
  %v145 = vpop.f32.mrf.mxu0
  %146 = vdwg.mxu0
  %v147 = vmax.f32 %v144, 0.0
  %v148 = vpack.c.bf16 %v147, %v147
  %v149 = vld [vmem:[%s5] sm:$0xf]
  %v150 = vld [vmem:[%s5 + $0x4] sm:$0xf]
  %v151 = vld [vmem:[%s5 + $0x8] sm:$0xf]
  %v152 = vld [vmem:[%s5 + $0xc] sm:$0xf]
  %v153 = vld [vmem:[%s5 + $0x10] sm:$0xf]
  %v154 = vld [vmem:[%s5 + $0x14] sm:$0xf]
  %v155 = vld [vmem:[%s5 + $0x18] sm:$0xf]
  %v156 = vld [vmem:[%s5 + $0x1c] sm:$0xf]
  %v157 = vld [vmem:[%s6] sm:$0x1]
  %v159 = vperm.slane %v157, 0
  %v169 = vunpack.c.l.b16 %v149
  %v170 = vunpack.c.l.b16 %v150
  %v171 = vunpack.c.l.b16 %v151
  %v172 = vunpack.c.l.b16 %v152
  %v173 = vunpack.c.l.b16 %v153
  %v174 = vunpack.c.l.b16 %v154
  %v175 = vunpack.c.l.b16 %v155
  %v176 = vunpack.c.l.b16 %v156
  %v177 = vpack.c.b16 %v170, %v169
  %v178 = vpack.c.b16 %v172, %v171
  %v179 = vpack.c.b16 %v174, %v173
  %v180 = vpack.c.b16 %v176, %v175
  %vm185 = vcmask 523264
  %v187 = vsel %vm185, %v148, 0
  %189 = vmatpush.bf16.msra.mxu0 0
  %190 = vmatpush.bf16.msra.mxu0 0
  %191 = vmatpush.bf16.msra.mxu0 0
  %192 = vmatpush.bf16.msra.mxu0 0
  %193 = vmatpush.bf16.msra.mxu0 %v180
  %194 = vmatpush.bf16.msra.mxu0 %v179
  %195 = vmatpush.bf16.msra.mxu0 %v178
  %196 = vmatpush.bf16.msra.mxu0 %v177
  %197 = vmatmul.bf16.gmra.mxu0 %v187
  %v198 = vpop.f32.mrf.mxu0
  %v199 = vadd.f32 %v159, %v198
  %v200 = vpop.f32.mrf.mxu0
  %201 = vdwg.mxu0
  %vm202 = vcmask 23552
  %203 = vst.msk [vmem:[%s7] sm:$0xff] %vm202, %v199
  // Predicated region
  $region30: #{tpu_custom_call.1} parent=0 // pred_check
    _
  $region31: #{tpu_custom_call.1} parent=0 // pred_check_branch
    %205 = sbr.rel (0) target = $region33
  $region32: #{tpu_custom_call.1} parent=0 // pred_region
    _
  $region33: #{tpu_custom_call.1} parent=0 // pred_fallthru
    _
  // Predicated region
  $region34: #{tpu_custom_call.1} parent=0 // pred_check
    _
  $region35: #{tpu_custom_call.1} parent=0 // pred_check_branch
    %207 = sbr.rel (0) target = $region37
  $region36: #{tpu_custom_call.1} parent=0 // pred_region
    _
  $region37: #{tpu_custom_call.1} parent=0 // pred_fallthru
    _

</llo_original>
